<compile_context>
chip_gen: v7x
topology: tpu7x:2x2x1
jax: 0.10.0
libtpu: 0.0.40
codegen_flags: <defaults>
</compile_context>

<pallas_src>
import functools

import jax
import jax.numpy as jnp
from jax.experimental import pallas as pl
from jax.experimental.pallas import tpu as pltpu


def _round_up(n: int, m: int) -> int:
    return ((n + m - 1) // m) * m


def _zprior_kernel(w_ref, b_ref, x_ref, out_ref, *, n_layers):
    # w_ref: (n_layers, P, P), b_ref: (n_layers, 1, P), x_ref/out_ref: (TB, P)
    h = x_ref[...]
    for i in range(n_layers):  # fixed, fully unrolled chain; no manual scheduling
        h = jnp.dot(h, w_ref[i], preferred_element_type=jnp.float32) + b_ref[i]
        if i < n_layers - 1:  # hidden layers get tanh; output layer is linear
            h = jnp.tanh(h)
    out_ref[...] = h.astype(out_ref.dtype)


def pack_zprior_params(params, lane=128):
    """One-time param transform: pack the MLP's [(W:(in,out), b:(out,)), ...] list into
    two contiguous, lane-padded buffers:
        packed_w: (n_layers, P, P)   packed_b: (n_layers, 1, P)
    with P = round_up(max feature dim, 128). Off-block entries are exact zeros."""
    n_layers = len(params)
    dims = [params[0][0].shape[0]] + [w.shape[1] for (w, _) in params]
    P = _round_up(max(dims), lane)
    packed_w = jnp.zeros((n_layers, P, P), jnp.float32)
    packed_b = jnp.zeros((n_layers, 1, P), jnp.float32)
    for i, (w, b) in enumerate(params):
        din, dout = w.shape
        packed_w = packed_w.at[i, :din, :dout].set(w.astype(jnp.float32))
        packed_b = packed_b.at[i, 0, :dout].set(b.astype(jnp.float32))
    return packed_w, packed_b


@functools.partial(jax.jit, static_argnames=("z_dim", "block_batch"))
def zprior_forward(u, packed_w, packed_b, *, z_dim, block_batch=512):
    """u: (batch, u_dim) f32. Returns (lam_mean, lam_log_var), each (batch, z_dim)."""
    batch, u_dim = u.shape
    n_layers, _, P = packed_w.shape

    # Batch tile: multiple of 8 sublanes, capped at block_batch (fits v7x 32 MiB scoped
    # VMEM with huge margin: TB=512, P=128 f32 tiles are 256 KiB each, params ~200 KiB).
    tb = min(block_batch, _round_up(batch, 8))
    padded_batch = _round_up(batch, tb)

    # Zero-pad batch rows and feature lanes once in the wrapper.
    x = jnp.zeros((padded_batch, P), jnp.float32).at[:batch, :u_dim].set(
        u.astype(jnp.float32)
    )

    grid = (padded_batch // tb,)
    out = pl.pallas_call(
        functools.partial(_zprior_kernel, n_layers=n_layers),
        out_shape=jax.ShapeDtypeStruct((padded_batch, P), jnp.float32),
        grid=grid,
        in_specs=[
            # Parameters: single block, constant index_map -> fetched once, stay resident.
            pl.BlockSpec((n_layers, P, P), lambda i: (0, 0, 0)),
            pl.BlockSpec((n_layers, 1, P), lambda i: (0, 0, 0)),
            # Activations: tiled along batch, auto double-buffered by the pipeline.
            pl.BlockSpec((tb, P), lambda i: (i, 0)),
        ],
        out_specs=pl.BlockSpec((tb, P), lambda i: (i, 0)),
        compiler_params=pltpu.CompilerParams(dimension_semantics=("parallel",)),
    )(packed_w, packed_b, x)

    z = out[:batch, : 2 * z_dim]          # lane-dense output, slice in the wrapper
    lam_mean, lam_log_var = jnp.split(z, 2, axis=-1)   # == torch.chunk(z, 2, -1)
    return lam_mean, lam_log_var


def _init_linear(key, in_features, out_features):
    """torch.nn.Linear default init: U(-1/sqrt(in), 1/sqrt(in)) for W and b.
    Weight stored pre-transposed as (in_features, out_features)."""
    kw, kb = jax.random.split(key)
    bound = 1.0 / jnp.sqrt(jnp.float32(in_features))
    w = jax.random.uniform(kw, (in_features, out_features), jnp.float32, -bound, bound)
    b = jax.random.uniform(kb, (out_features,), jnp.float32, -bound, bound)
    return w, b


def init_zprior_params(key, u_dim, z_dim, n_layers=3, hidden_size=32):
    assert n_layers >= 3
    dims = [u_dim] + [hidden_size] * (n_layers - 1) + [2 * z_dim]
    keys = jax.random.split(key, n_layers)
    return [_init_linear(keys[i], dims[i], dims[i + 1]) for i in range(n_layers)]


def _reference_forward(u, params):
    """Pure-JAX reference mirroring the PyTorch MLP + torch.chunk."""
    h = u
    for i, (w, b) in enumerate(params):
        h = h @ w + b
        if i < len(params) - 1:
            h = jnp.tanh(h)
    mean, log_var = jnp.split(h, 2, axis=-1)
    return mean, log_var


if __name__ == "__main__":
    # Small deterministic example consistent with ZPriorContinuous defaults.
    batch, u_dim, z_dim, n_layers, hidden_size = 8, 4, 2, 3, 32

    key = jax.random.PRNGKey(0)
    k_u, k_params = jax.random.split(key)
    u = jax.random.normal(k_u, (batch, u_dim), dtype=jnp.float32)

    params = init_zprior_params(k_params, u_dim, z_dim, n_layers, hidden_size)
    packed_w, packed_b = pack_zprior_params(params)   # one-time packing, outside hot path

    lam_mean, lam_log_var = zprior_forward(u, packed_w, packed_b, z_dim=z_dim)
    jax.block_until_ready((lam_mean, lam_log_var))

    mean_ref, log_var_ref = _reference_forward(u, params)
    assert lam_mean.shape == (batch, z_dim) and lam_log_var.shape == (batch, z_dim)
    assert jnp.allclose(lam_mean, mean_ref, atol=1e-5, rtol=1e-5)
    assert jnp.allclose(lam_log_var, log_var_ref, atol=1e-5, rtol=1e-5)

    print("KERNEL_OK")
</pallas_src>

<mosaic_0001>
module attributes {stable_mosaic.version = 11 : i64} {
  func.func @_zprior_kernel(%arg0: i32, %arg1: memref<3x128x128xf32, #tpu.memory_space<vmem>>, %arg2: memref<3x1x128xf32, #tpu.memory_space<vmem>>, %arg3: memref<8x128xf32, #tpu.memory_space<vmem>>, %arg4: memref<8x128xf32, #tpu.memory_space<vmem>>) attributes {dimension_semantics = [#tpu.dimension_semantics<parallel>], iteration_bounds = array<i64: 1>, scalar_prefetch = 0 : i64, scratch_operands = 0 : i64, tpu.core_type = #tpu.core_type<tc>, window_params = [{pipeline_mode = #tpu.pipeline_mode<synchronous>, transform_indices = @transform_0, window_bounds = array<i64: 3, 128, 128>}, {pipeline_mode = #tpu.pipeline_mode<synchronous>, transform_indices = @transform_1, window_bounds = array<i64: 3, 1, 128>}, {transform_indices = @transform_2, window_bounds = array<i64: 8, 128>}, {transform_indices = @transform_3, window_bounds = array<i64: 8, 128>}]} {
    %c0 = arith.constant 0 : index
    %c0_0 = arith.constant 0 : index
    %0 = vector.load %arg3[%c0, %c0_0] : memref<8x128xf32, #tpu.memory_space<vmem>>, vector<8x128xf32>
    %c0_1 = arith.constant 0 : index
    %c0_2 = arith.constant 0 : index
    %c0_3 = arith.constant 0 : index
    %1 = vector.load %arg1[%c0_1, %c0_2, %c0_3] : memref<3x128x128xf32, #tpu.memory_space<vmem>>, vector<1x128x128xf32>
    %2 = vector.shape_cast %1 : vector<1x128x128xf32> to vector<128x128xf32>
    %cst = arith.constant dense<0.000000e+00> : vector<8x128xf32>
    %3 = tpu.matmul %0, %2, %cst {dimension_numbers = #tpu.dot_dimension_numbers<[1], [0], [0], [1], [0, 0, 1, 1], [], []>} : vector<8x128xf32>, vector<128x128xf32>, vector<8x128xf32> -> vector<8x128xf32>
    %c0_4 = arith.constant 0 : index
    %c0_5 = arith.constant 0 : index
    %c0_6 = arith.constant 0 : index
    %4 = vector.load %arg2[%c0_4, %c0_5, %c0_6] : memref<3x1x128xf32, #tpu.memory_space<vmem>>, vector<1x1x128xf32>
    %5 = vector.shape_cast %4 : vector<1x1x128xf32> to vector<1x128xf32>
    %6 = vector.broadcast %5 : vector<1x128xf32> to vector<8x128xf32>
    %7 = arith.addf %3, %6 : vector<8x128xf32>
    %8 = math.tanh %7 : vector<8x128xf32>
    %c1 = arith.constant 1 : index
    %c0_7 = arith.constant 0 : index
    %c0_8 = arith.constant 0 : index
    %9 = vector.load %arg1[%c1, %c0_7, %c0_8] : memref<3x128x128xf32, #tpu.memory_space<vmem>>, vector<1x128x128xf32>
    %10 = vector.shape_cast %9 : vector<1x128x128xf32> to vector<128x128xf32>
    %cst_9 = arith.constant dense<0.000000e+00> : vector<8x128xf32>
    %11 = tpu.matmul %8, %10, %cst_9 {dimension_numbers = #tpu.dot_dimension_numbers<[1], [0], [0], [1], [0, 0, 1, 1], [], []>} : vector<8x128xf32>, vector<128x128xf32>, vector<8x128xf32> -> vector<8x128xf32>
    %c1_10 = arith.constant 1 : index
    %c0_11 = arith.constant 0 : index
    %c0_12 = arith.constant 0 : index
    %12 = vector.load %arg2[%c1_10, %c0_11, %c0_12] : memref<3x1x128xf32, #tpu.memory_space<vmem>>, vector<1x1x128xf32>
    %13 = vector.shape_cast %12 : vector<1x1x128xf32> to vector<1x128xf32>
    %14 = vector.broadcast %13 : vector<1x128xf32> to vector<8x128xf32>
    %15 = arith.addf %11, %14 : vector<8x128xf32>
    %16 = math.tanh %15 : vector<8x128xf32>
    %c2 = arith.constant 2 : index
    %c0_13 = arith.constant 0 : index
    %c0_14 = arith.constant 0 : index
    %17 = vector.load %arg1[%c2, %c0_13, %c0_14] : memref<3x128x128xf32, #tpu.memory_space<vmem>>, vector<1x128x128xf32>
    %18 = vector.shape_cast %17 : vector<1x128x128xf32> to vector<128x128xf32>
    %cst_15 = arith.constant dense<0.000000e+00> : vector<8x128xf32>
    %19 = tpu.matmul %16, %18, %cst_15 {dimension_numbers = #tpu.dot_dimension_numbers<[1], [0], [0], [1], [0, 0, 1, 1], [], []>} : vector<8x128xf32>, vector<128x128xf32>, vector<8x128xf32> -> vector<8x128xf32>
    %c2_16 = arith.constant 2 : index
    %c0_17 = arith.constant 0 : index
    %c0_18 = arith.constant 0 : index
    %20 = vector.load %arg2[%c2_16, %c0_17, %c0_18] : memref<3x1x128xf32, #tpu.memory_space<vmem>>, vector<1x1x128xf32>
    %21 = vector.shape_cast %20 : vector<1x1x128xf32> to vector<1x128xf32>
    %22 = vector.broadcast %21 : vector<1x128xf32> to vector<8x128xf32>
    %23 = arith.addf %19, %22 : vector<8x128xf32>
    %c0_19 = arith.constant 0 : index
    %c0_20 = arith.constant 0 : index
    %24 = vector.load %arg4[%c0_19, %c0_20] : memref<8x128xf32, #tpu.memory_space<vmem>>, vector<8x128xf32>
    tpu.vector_store %arg4[%c0_19, %c0_20], %23 {strides = array<i32>} : memref<8x128xf32, #tpu.memory_space<vmem>>, vector<8x128xf32>,
    return
  }
  func.func @transform_0(%arg0: i32) -> (i32, i32, i32) {
    %c0_i32 = arith.constant 0 : i32
    %c0_i32_0 = arith.constant 0 : i32
    %c0_i32_1 = arith.constant 0 : i32
    %c0_i32_2 = arith.constant 0 : i32
    return %c0_i32, %c0_i32_0, %c0_i32_1 : i32, i32, i32
  }
  func.func @transform_1(%arg0: i32) -> (i32, i32, i32) {
    %c0_i32 = arith.constant 0 : i32
    %c0_i32_0 = arith.constant 0 : i32
    %c0_i32_1 = arith.constant 0 : i32
    %c0_i32_2 = arith.constant 0 : i32
    return %c0_i32, %c0_i32_0, %c0_i32_1 : i32, i32, i32
  }
  func.func @transform_2(%arg0: i32) -> (i32, i32) {
    %c0_i32 = arith.constant 0 : i32
    %c0_i32_0 = arith.constant 0 : i32
    return %arg0, %c0_i32 : i32, i32
  }
  func.func @transform_3(%arg0: i32) -> (i32, i32) {
    %c0_i32 = arith.constant 0 : i32
    %c0_i32_0 = arith.constant 0 : i32
    return %arg0, %c0_i32 : i32, i32
  }
}

</mosaic_0001>

<llo_original>
// kernel: zprior_forward.1
$region0: #{zprior_forward.1}
  #allocation0 [shape = 'u32[]', space=smem, size = 0x4, offset = 0x4, fixed_abs, tag = 'smem constant byte address 0x4 - core index']
  #allocation1 [shape = 'u32[144,128]{1,0:T(1,128)}', space=vmem, size = 0x12000, scoped, tag = 'internal scratch']
  %s0 = inlined_call_operand.hbm [shape: f32[3,128,128], index: 0, kind: input, shape index: {}]
  %s1 = inlined_call_operand.vmem [shape: f32[3,1,128], index: 1, kind: input, shape index: {}]
  %s2 = inlined_call_operand.vmem [shape: f32[8,128], index: 2, kind: input, shape index: {}]
  %s3 = inlined_call_operand.vmem [shape: f32[8,128], index: 3, kind: output, shape index: {}]
  %s4 = sld [smem:[#allocation0]]
  $region26: #{zprior_forward.1} parent=0
    _
  %s6 = ssub.s32 1, %s4
  %s7 = scalar_select 0, %s6, %s4
  $region1: #{zprior_forward.1} parent=0
    #allocation2 [shape = 'u8[196608]{0}', space=vmem, size = 0x30000, scoped, tag = 'input window, operand 0, single buffered']
    #allocation3 [shape = 's32[1]{0}', space=sflag, size = 0x4, scoped, tag = 'scoped memory for zprior_forward.1']
    %8 = vsyncpa [#allocation3], 0
    // Predicated region
    $region2: #{zprior_forward.1} parent=1 // pred_check
      _
    $region3: #{zprior_forward.1} parent=1 // pred_check_branch
      %10 = sbr.rel (0) target = $region5
    $region4: #{zprior_forward.1} parent=1 // pred_region
      %s12 = ssub.s32 6144, 6144
      %13 = vsyncadd [#allocation3], %s12
      %s14 = sshll.u32 [#allocation2], 4
      %s15 = int_to_ptr.vmem [resolvable:$true] %s14
      %20 = dma.hbm_to_vmem [thread:$0]  %s0, 6144, %s15, [#allocation3], 128, 128, 8
    $region5: #{zprior_forward.1} parent=1 // pred_fallthru
      _
    // Predicated region
    $region6: #{zprior_forward.1} parent=1 // pred_check
      _
    $region7: #{zprior_forward.1} parent=1 // pred_check_branch
      %22 = sbr.rel (0) target = $region9
    $region8: #{zprior_forward.1} parent=1 // pred_region
      _
    $region9: #{zprior_forward.1} parent=1 // pred_fallthru
      _
    // Predicated region
    $region10: #{zprior_forward.1} parent=1 // pred_check
      _
    $region11: #{zprior_forward.1} parent=1 // pred_check_branch
      %24 = sbr.rel (0) target = $region13
    $region12: #{zprior_forward.1} parent=1 // pred_region
      _
    $region13: #{zprior_forward.1} parent=1 // pred_fallthru
      _
    // Predicated region
    $region14: #{zprior_forward.1} parent=1 // pred_check
      _
    $region15: #{zprior_forward.1} parent=1 // pred_check_branch
      %26 = sbr.rel (0) target = $region17
    $region16: #{zprior_forward.1} parent=1 // pred_region
      %27 = dma.done [#allocation3], 6144
    $region17: #{zprior_forward.1} parent=1 // pred_fallthru
      _
    %v28 = vld [vmem:[%s2] sm:$0xff]
    %v29 = vld [vmem:[#allocation2] sm:$0xff]
    %v30 = vld [vmem:[#allocation2 + $0x8] sm:$0xff]
    %v31 = vld [vmem:[#allocation2 + $0x10] sm:$0xff]
    %v32 = vld [vmem:[#allocation2 + $0x18] sm:$0xff]
    %v33 = vld [vmem:[#allocation2 + $0x20] sm:$0xff]
    %v34 = vld [vmem:[#allocation2 + $0x28] sm:$0xff]
    %v35 = vld [vmem:[#allocation2 + $0x30] sm:$0xff]
    %v36 = vld [vmem:[#allocation2 + $0x38] sm:$0xff]
    %v37 = vld [vmem:[#allocation2 + $0x40] sm:$0xff]
    %v38 = vld [vmem:[#allocation2 + $0x48] sm:$0xff]
    %v39 = vld [vmem:[#allocation2 + $0x50] sm:$0xff]
    %v40 = vld [vmem:[#allocation2 + $0x58] sm:$0xff]
    %v41 = vld [vmem:[#allocation2 + $0x60] sm:$0xff]
    %v42 = vld [vmem:[#allocation2 + $0x68] sm:$0xff]
    %v43 = vld [vmem:[#allocation2 + $0x70] sm:$0xff]
    %v44 = vld [vmem:[#allocation2 + $0x78] sm:$0xff]
    %v45 = vld [vmem:[%s1] sm:$0x1]
    %v47 = vlaneseq
    %v48 = vshrl.u32 %v47, 7
    %v49 = vsub.s32 0, %v48
    %v50 = vrot.slane %v45, %v49
    %52 = vmatprep.subr.mxu0 0.0
    %53 = vmatpush1.msra.mxu0 %v29
    %54 = vmatprep.subr.mxu0 0.0
    %55 = vmatpush1.msra.mxu0 %v30
    %56 = vmatprep.subr.mxu0 0.0
    %57 = vmatpush1.msra.mxu0 %v31
    %58 = vmatprep.subr.mxu0 0.0
    %59 = vmatpush1.msra.mxu0 %v32
    %60 = vmatprep.subr.mxu0 0.0
    %61 = vmatpush1.msra.mxu0 %v33
    %62 = vmatprep.subr.mxu0 0.0
    %63 = vmatpush1.msra.mxu0 %v34
    %64 = vmatprep.subr.mxu0 0.0
    %65 = vmatpush1.msra.mxu0 %v35
    %66 = vmatprep.subr.mxu0 0.0
    %67 = vmatpush1.msra.mxu0 %v36
    %68 = vmatprep.subr.mxu0 0.0
    %69 = vmatpush1.msra.mxu0 %v37
    %70 = vmatprep.subr.mxu0 0.0
    %71 = vmatpush1.msra.mxu0 %v38
    %72 = vmatprep.subr.mxu0 0.0
    %73 = vmatpush1.msra.mxu0 %v39
    %74 = vmatprep.subr.mxu0 0.0
    %75 = vmatpush1.msra.mxu0 %v40
    %76 = vmatprep.subr.mxu0 0.0
    %77 = vmatpush1.msra.mxu0 %v41
    %78 = vmatprep.subr.mxu0 0.0
    %79 = vmatpush1.msra.mxu0 %v42
    %80 = vmatprep.subr.mxu0 0.0
    %81 = vmatpush1.msra.mxu0 %v43
    %82 = vmatprep.subr.mxu0 0.0
    %83 = vmatpush1.msra.mxu0 %v44
    %84 = vmatprep.subr.mxu0 0.0
    %85 = vmatpush1.msra.mxu0 0.0
    %86 = vmatprep.subr.mxu0 0.0
    %87 = vmatpush1.msra.mxu0 0.0
    %88 = vmatprep.subr.mxu0 0.0
    %89 = vmatpush1.msra.mxu0 0.0
    %90 = vmatprep.subr.mxu0 0.0
    %91 = vmatpush1.msra.mxu0 0.0
    %92 = vmatprep.subr.mxu0 0.0
    %93 = vmatpush1.msra.mxu0 0.0
    %94 = vmatprep.subr.mxu0 0.0
    %95 = vmatpush1.msra.mxu0 0.0
    %96 = vmatprep.subr.mxu0 0.0
    %97 = vmatpush1.msra.mxu0 0.0
    %98 = vmatprep.subr.mxu0 0.0
    %99 = vmatpush1.msra.mxu0 0.0
    %100 = vmatprep.subr.mxu0 0.0
    %101 = vmatpush1.msra.mxu0 0.0
    %102 = vmatprep.subr.mxu0 0.0
    %103 = vmatpush1.msra.mxu0 0.0
    %104 = vmatprep.subr.mxu0 0.0
    %105 = vmatpush1.msra.mxu0 0.0
    %106 = vmatprep.subr.mxu0 0.0
    %107 = vmatpush1.msra.mxu0 0.0
    %108 = vmatprep.subr.mxu0 0.0
    %109 = vmatpush1.msra.mxu0 0.0
    %110 = vmatprep.subr.mxu0 0.0
    %111 = vmatpush1.msra.mxu0 0.0
    %112 = vmatprep.subr.mxu0 0.0
    %113 = vmatpush1.msra.mxu0 0.0
    %114 = vmatprep.subr.mxu0 0.0
    %115 = vmatpush1.msra.mxu0 0.0
    %116 = vmatprep.mubr.f32.mxu0 0.0
    %117 = vmatmul.mubr.f32.gmra.mrb[0].mxu0 %v28
    %v118 = vpop.f32.mrb[0].mxu0
    %v119 = vadd.f32 %v50, %v118
    %v120 = vpop.f32.mrb[0].mxu0
    %121 = vdwg.mxu0
    %v122 = vtanh.pop %v119
    %s123 = scalar_lea.vmem [#allocation2], 128
    %v124 = vld [vmem:[%s123] sm:$0xff]
    %v125 = vld [vmem:[%s123 + $0x8] sm:$0xff]
    %v126 = vld [vmem:[%s123 + $0x10] sm:$0xff]
    %v127 = vld [vmem:[%s123 + $0x18] sm:$0xff]
    %v128 = vld [vmem:[%s123 + $0x20] sm:$0xff]
    %v129 = vld [vmem:[%s123 + $0x28] sm:$0xff]
    %v130 = vld [vmem:[%s123 + $0x30] sm:$0xff]
    %v131 = vld [vmem:[%s123 + $0x38] sm:$0xff]
    %v132 = vld [vmem:[%s123 + $0x40] sm:$0xff]
    %v133 = vld [vmem:[%s123 + $0x48] sm:$0xff]
    %v134 = vld [vmem:[%s123 + $0x50] sm:$0xff]
    %v135 = vld [vmem:[%s123 + $0x58] sm:$0xff]
    %v136 = vld [vmem:[%s123 + $0x60] sm:$0xff]
    %v137 = vld [vmem:[%s123 + $0x68] sm:$0xff]
    %v138 = vld [vmem:[%s123 + $0x70] sm:$0xff]
    %v139 = vld [vmem:[%s123 + $0x78] sm:$0xff]
    %s140 = scalar_lea.vmem %s1, 1
    %v141 = vld [vmem:[%s140] sm:$0x1]
    %v143 = vlaneseq
    %v144 = vshrl.u32 %v143, 7
    %v145 = vsub.s32 0, %v144
    %v146 = vrot.slane %v141, %v145
    %148 = vmatprep.subr.mxu0 0.0
    %149 = vmatpush1.msra.mxu0 %v124
    %150 = vmatprep.subr.mxu0 0.0
    %151 = vmatpush1.msra.mxu0 %v125
    %152 = vmatprep.subr.mxu0 0.0
    %153 = vmatpush1.msra.mxu0 %v126
    %154 = vmatprep.subr.mxu0 0.0
    %155 = vmatpush1.msra.mxu0 %v127
    %156 = vmatprep.subr.mxu0 0.0
    %157 = vmatpush1.msra.mxu0 %v128
    %158 = vmatprep.subr.mxu0 0.0
    %159 = vmatpush1.msra.mxu0 %v129
    %160 = vmatprep.subr.mxu0 0.0
    %161 = vmatpush1.msra.mxu0 %v130
    %162 = vmatprep.subr.mxu0 0.0
    %163 = vmatpush1.msra.mxu0 %v131
    %164 = vmatprep.subr.mxu0 0.0
    %165 = vmatpush1.msra.mxu0 %v132
    %166 = vmatprep.subr.mxu0 0.0
    %167 = vmatpush1.msra.mxu0 %v133
    %168 = vmatprep.subr.mxu0 0.0
    %169 = vmatpush1.msra.mxu0 %v134
    %170 = vmatprep.subr.mxu0 0.0
    %171 = vmatpush1.msra.mxu0 %v135
    %172 = vmatprep.subr.mxu0 0.0
    %173 = vmatpush1.msra.mxu0 %v136
    %174 = vmatprep.subr.mxu0 0.0
    %175 = vmatpush1.msra.mxu0 %v137
    %176 = vmatprep.subr.mxu0 0.0
    %177 = vmatpush1.msra.mxu0 %v138
    %178 = vmatprep.subr.mxu0 0.0
    %179 = vmatpush1.msra.mxu0 %v139
    %180 = vmatprep.subr.mxu0 0.0
    %181 = vmatpush1.msra.mxu0 0.0
    %182 = vmatprep.subr.mxu0 0.0
    %183 = vmatpush1.msra.mxu0 0.0
    %184 = vmatprep.subr.mxu0 0.0
    %185 = vmatpush1.msra.mxu0 0.0
    %186 = vmatprep.subr.mxu0 0.0
    %187 = vmatpush1.msra.mxu0 0.0
    %188 = vmatprep.subr.mxu0 0.0
    %189 = vmatpush1.msra.mxu0 0.0
    %190 = vmatprep.subr.mxu0 0.0
    %191 = vmatpush1.msra.mxu0 0.0
    %192 = vmatprep.subr.mxu0 0.0
    %193 = vmatpush1.msra.mxu0 0.0
    %194 = vmatprep.subr.mxu0 0.0
    %195 = vmatpush1.msra.mxu0 0.0
    %196 = vmatprep.subr.mxu0 0.0
    %197 = vmatpush1.msra.mxu0 0.0
    %198 = vmatprep.subr.mxu0 0.0
    %199 = vmatpush1.msra.mxu0 0.0
    %200 = vmatprep.subr.mxu0 0.0
    %201 = vmatpush1.msra.mxu0 0.0
    %202 = vmatprep.subr.mxu0 0.0
    %203 = vmatpush1.msra.mxu0 0.0
    %204 = vmatprep.subr.mxu0 0.0
    %205 = vmatpush1.msra.mxu0 0.0
    %206 = vmatprep.subr.mxu0 0.0
    %207 = vmatpush1.msra.mxu0 0.0
    %208 = vmatprep.subr.mxu0 0.0
    %209 = vmatpush1.msra.mxu0 0.0
    %210 = vmatprep.subr.mxu0 0.0
    %211 = vmatpush1.msra.mxu0 0.0
    %212 = vmatprep.mubr.f32.mxu0 0.0
    %213 = vmatmul.mubr.f32.gmra.mrb[0].mxu0 %v122
    %v214 = vpop.f32.mrb[0].mxu0
    %v215 = vadd.f32 %v146, %v214
    %v216 = vpop.f32.mrb[0].mxu0
    %217 = vdwg.mxu0
    %v218 = vtanh.pop %v215
    %s219 = scalar_lea.vmem [#allocation2], 256
    %v220 = vld [vmem:[%s219] sm:$0xff]
    %v221 = vld [vmem:[%s219 + $0x8] sm:$0xff]
    %v222 = vld [vmem:[%s219 + $0x10] sm:$0xff]
    %v223 = vld [vmem:[%s219 + $0x18] sm:$0xff]
    %v224 = vld [vmem:[%s219 + $0x20] sm:$0xff]
    %v225 = vld [vmem:[%s219 + $0x28] sm:$0xff]
    %v226 = vld [vmem:[%s219 + $0x30] sm:$0xff]
    %v227 = vld [vmem:[%s219 + $0x38] sm:$0xff]
    %v228 = vld [vmem:[%s219 + $0x40] sm:$0xff]
    %v229 = vld [vmem:[%s219 + $0x48] sm:$0xff]
    %v230 = vld [vmem:[%s219 + $0x50] sm:$0xff]
    %v231 = vld [vmem:[%s219 + $0x58] sm:$0xff]
    %v232 = vld [vmem:[%s219 + $0x60] sm:$0xff]
    %v233 = vld [vmem:[%s219 + $0x68] sm:$0xff]
    %v234 = vld [vmem:[%s219 + $0x70] sm:$0xff]
    %v235 = vld [vmem:[%s219 + $0x78] sm:$0xff]
    %s236 = scalar_lea.vmem %s1, 2
    %v237 = vld [vmem:[%s236] sm:$0x1]
    %v239 = vlaneseq
    %v240 = vshrl.u32 %v239, 7
    %v241 = vsub.s32 0, %v240
    %v242 = vrot.slane %v237, %v241
    %244 = vmatprep.subr.mxu0 0.0
    %245 = vmatpush1.msra.mxu0 %v220
    %246 = vmatprep.subr.mxu0 0.0
    %247 = vmatpush1.msra.mxu0 %v221
    %248 = vmatprep.subr.mxu0 0.0
    %249 = vmatpush1.msra.mxu0 %v222
    %250 = vmatprep.subr.mxu0 0.0
    %251 = vmatpush1.msra.mxu0 %v223
    %252 = vmatprep.subr.mxu0 0.0
    %253 = vmatpush1.msra.mxu0 %v224
    %254 = vmatprep.subr.mxu0 0.0
    %255 = vmatpush1.msra.mxu0 %v225
    %256 = vmatprep.subr.mxu0 0.0
    %257 = vmatpush1.msra.mxu0 %v226
    %258 = vmatprep.subr.mxu0 0.0
    %259 = vmatpush1.msra.mxu0 %v227
    %260 = vmatprep.subr.mxu0 0.0
    %261 = vmatpush1.msra.mxu0 %v228
    %262 = vmatprep.subr.mxu0 0.0
    %263 = vmatpush1.msra.mxu0 %v229
    %264 = vmatprep.subr.mxu0 0.0
    %265 = vmatpush1.msra.mxu0 %v230
    %266 = vmatprep.subr.mxu0 0.0
    %267 = vmatpush1.msra.mxu0 %v231
    %268 = vmatprep.subr.mxu0 0.0
    %269 = vmatpush1.msra.mxu0 %v232
    %270 = vmatprep.subr.mxu0 0.0
    %271 = vmatpush1.msra.mxu0 %v233
    %272 = vmatprep.subr.mxu0 0.0
    %273 = vmatpush1.msra.mxu0 %v234
    %274 = vmatprep.subr.mxu0 0.0
    %275 = vmatpush1.msra.mxu0 %v235
    %276 = vmatprep.subr.mxu0 0.0
    %277 = vmatpush1.msra.mxu0 0.0
    %278 = vmatprep.subr.mxu0 0.0
    %279 = vmatpush1.msra.mxu0 0.0
    %280 = vmatprep.subr.mxu0 0.0
    %281 = vmatpush1.msra.mxu0 0.0
    %282 = vmatprep.subr.mxu0 0.0
    %283 = vmatpush1.msra.mxu0 0.0
    %284 = vmatprep.subr.mxu0 0.0
    %285 = vmatpush1.msra.mxu0 0.0
    %286 = vmatprep.subr.mxu0 0.0
    %287 = vmatpush1.msra.mxu0 0.0
    %288 = vmatprep.subr.mxu0 0.0
    %289 = vmatpush1.msra.mxu0 0.0
    %290 = vmatprep.subr.mxu0 0.0
    %291 = vmatpush1.msra.mxu0 0.0
    %292 = vmatprep.subr.mxu0 0.0
    %293 = vmatpush1.msra.mxu0 0.0
    %294 = vmatprep.subr.mxu0 0.0
    %295 = vmatpush1.msra.mxu0 0.0
    %296 = vmatprep.subr.mxu0 0.0
    %297 = vmatpush1.msra.mxu0 0.0
    %298 = vmatprep.subr.mxu0 0.0
    %299 = vmatpush1.msra.mxu0 0.0
    %300 = vmatprep.subr.mxu0 0.0
    %301 = vmatpush1.msra.mxu0 0.0
    %302 = vmatprep.subr.mxu0 0.0
    %303 = vmatpush1.msra.mxu0 0.0
    %304 = vmatprep.subr.mxu0 0.0
    %305 = vmatpush1.msra.mxu0 0.0
    %306 = vmatprep.subr.mxu0 0.0
    %307 = vmatpush1.msra.mxu0 0.0
    %308 = vmatprep.mubr.f32.mxu0 0.0
    %309 = vmatmul.mubr.f32.gmra.mrb[0].mxu0 %v218
    %v310 = vpop.f32.mrb[0].mxu0
    %v311 = vadd.f32 %v242, %v310
    %v312 = vpop.f32.mrb[0].mxu0
    %313 = vdwg.mxu0
    %314 = vst [vmem:[%s3] sm:$0xff] %v311
    // Predicated region
    $region18: #{zprior_forward.1} parent=1 // pred_check
      _
    $region19: #{zprior_forward.1} parent=1 // pred_check_branch
      %316 = sbr.rel (0) target = $region21
    $region20: #{zprior_forward.1} parent=1 // pred_region
      _
    $region21: #{zprior_forward.1} parent=1 // pred_fallthru
      _
    // Predicated region
    $region22: #{zprior_forward.1} parent=1 // pred_check
      _
    $region23: #{zprior_forward.1} parent=1 // pred_check_branch
      %318 = sbr.rel (0) target = $region25
    $region24: #{zprior_forward.1} parent=1 // pred_region
      _
    $region25: #{zprior_forward.1} parent=1 // pred_fallthru
      _
    %319 = vsyncpa [#allocation3], 1

</llo_original>
